<compile_context>
chip_gen: v7x
topology: tpu7x:2x2x1
jax: 0.10.0
libtpu: 0.0.40
codegen_flags: <defaults>
</compile_context>

<pallas_src>
import jax
import jax.numpy as jnp
from jax import lax
from jax.experimental import pallas as pl
from jax.experimental.pallas import tpu as pltpu


def vnet_kernel(idx_ref, w1_ref, b1_ref, w2_ref, b2_ref, w3_ref, b3_ref, out_ref):
    # idx: (1, TB) i32 (lane-dense), w1: (F, H) f32, b1: (1, H) f32, w2: (H, H) f32,
    # b2: (1, H) f32, w3: (1, H) f32 (row form), b3: (1,) f32 in SMEM, out: (1, TB) f32.
    F_ = w1_ref.shape[0]

    # ---- F-entry output LUT: run the net once on the identity one-hot batch ----
    # identity @ W1 == W1, so layer 1 is only a bias add (the (TB,F)@(F,H) matmul and the
    # broadcasted_iota one-hot build from the previous version are gone).
    h1 = w1_ref[...] + b1_ref[...]                                   # (F, H)
    h1 = h1 * jax.nn.sigmoid(h1)                                     # swish, f32 (v5e-safe)

    h2 = jnp.dot(h1, w2_ref[...], preferred_element_type=jnp.float32) + b2_ref[...]
    h2 = h2 * jax.nn.sigmoid(h2)                                     # (F, H)

    # Head (N=1): VPU multiply + lane (XLU) reduction instead of a 1-wide MXU matmul.
    lut = jnp.sum(h2 * w3_ref[...], axis=-1, keepdims=True) + b3_ref[0]   # (F, 1)

    # ---- per-sample gather: out[0, i] = lut[idx[i]] via an F-way select-sum ----
    idx = idx_ref[...]                                               # (1, TB)
    rows = lax.broadcasted_iota(jnp.int32, (F_, idx.shape[1]), 0)    # (F, TB) feature ids
    mask = rows == idx                                               # broadcast over sublanes
    # lane-dense (1, TB) result -> unmasked vst stores
    out_ref[...] = jnp.sum(jnp.where(mask, lut, 0.0), axis=0, keepdims=True)


def _default_num_blocks():
    # v7x has 2 TensorCores per chip -> give each one "parallel" block; single-TC chips
    # (v5e/v6e) get a single block so there is only one ~600-cycle grid-step overhead.
    try:
        kind = jax.devices()[0].device_kind.lower()
        if "v7" in kind or "7x" in kind:
            return 2
    except Exception:
        pass
    return 1


def vnet_forward(idx, w1, b1, w2, b2, w3, b3, *, num_blocks=None):
    """idx: (B,) or (B, 1) int32 discrete observations. Weights stored as (in, out) f32
    (transpose of PyTorch's (out, in)). Returns (B, 1) f32."""
    idx = jnp.asarray(idx, jnp.int32).reshape(-1)
    B = idx.shape[0]
    F_, H = w1.shape

    if num_blocks is None:
        num_blocks = _default_num_blocks()

    # Per-block batch tile: lane axis must be a multiple of 128 (or the full array); cap at
    # 4096 so VMEM stays trivially small even for huge batches on v7x's 64 MiB VMEM.
    tile = min(-(-B // num_blocks), 4096)
    tile = -(-tile // 128) * 128
    grid_n = -(-B // tile)
    b_pad = tile * grid_n

    # lane-dense (1, B_pad) index row; pad value 0 is a valid index, padded outputs dropped.
    idx_row = jnp.pad(idx, (0, b_pad - B)).reshape(1, b_pad)

    w1f = jnp.asarray(w1, jnp.float32)
    b1f = jnp.asarray(b1, jnp.float32).reshape(1, H)
    w2f = jnp.asarray(w2, jnp.float32)
    b2f = jnp.asarray(b2, jnp.float32).reshape(1, H)
    w3_row = jnp.asarray(w3, jnp.float32).reshape(1, H)   # (H, 1) -> (1, H) row for VPU reduce
    b3_s = jnp.asarray(b3, jnp.float32).reshape(1)         # scalar, lives in SMEM

    out = pl.pallas_call(
        vnet_kernel,
        out_shape=jax.ShapeDtypeStruct((1, b_pad), jnp.float32),
        grid=(grid_n,),
        in_specs=[
            pl.BlockSpec((1, tile), lambda i: (0, i)),                 # idx: tiled over batch
            pl.BlockSpec((F_, H), lambda i: (0, 0)),                   # w1 (VMEM-resident)
            pl.BlockSpec((1, H), lambda i: (0, 0)),                    # b1
            pl.BlockSpec((H, H), lambda i: (0, 0)),                    # w2
            pl.BlockSpec((1, H), lambda i: (0, 0)),                    # b2
            pl.BlockSpec((1, H), lambda i: (0, 0)),                    # w3 (row form)
            pl.BlockSpec(memory_space=pltpu.MemorySpace.SMEM),         # b3 scalar (no VMEM tile)
        ],
        out_specs=pl.BlockSpec((1, tile), lambda i: (0, i)),           # lane-dense output
        compiler_params=pltpu.CompilerParams(
            dimension_semantics=("parallel",)),                        # v7x: one block per TC
    )(idx_row, w1f, b1f, w2f, b2f, w3_row, b3_s)

    return out[0, :B].reshape(B, 1)


def init_params(key, in_features, hid_num):
    """Kaiming-normal (fan_in, gain=sqrt(2)) weights, zero biases — matches VNet.__init__.
    Weights are stored as (in, out) = transpose of torch's (out, in)."""
    k1, k2, k3 = jax.random.split(key, 3)
    w1 = jax.random.normal(k1, (in_features, hid_num), jnp.float32) * jnp.sqrt(2.0 / in_features)
    b1 = jnp.zeros((1, hid_num), jnp.float32)
    w2 = jax.random.normal(k2, (hid_num, hid_num), jnp.float32) * jnp.sqrt(2.0 / hid_num)
    b2 = jnp.zeros((1, hid_num), jnp.float32)
    w3 = jax.random.normal(k3, (hid_num, 1), jnp.float32) * jnp.sqrt(2.0 / hid_num)
    b3 = jnp.zeros((1, 1), jnp.float32)
    return w1, b1, w2, b2, w3, b3


def vnet_reference(idx, w1, b1, w2, b2, w3, b3):
    # Pure f32 reference (matches the PyTorch forward).
    onehot = jax.nn.one_hot(idx.reshape(-1), w1.shape[0], dtype=jnp.float32)
    h1 = onehot @ w1 + b1
    h1 = h1 * jax.nn.sigmoid(h1)
    h2 = h1 @ w2 + b2
    h2 = h2 * jax.nn.sigmoid(h2)
    return h2 @ w3 + b3


if __name__ == "__main__":
    IN_FEATURES = 16   # observation_space.n
    HID_NUM = 32
    BATCH = 256

    key = jax.random.PRNGKey(0)
    k_idx, k_params = jax.random.split(key)

    # discrete observations (indices into the one-hot space)
    idx = jax.random.randint(k_idx, (BATCH, 1), 0, IN_FEATURES, dtype=jnp.int32)
    params = init_params(k_params, IN_FEATURES, HID_NUM)

    out = jax.block_until_ready(vnet_forward(idx, *params))
    ref = vnet_reference(idx, *params)

    assert out.shape == (BATCH, 1)
    # All-f32 path; tolerance only covers MXU accumulation-order / default-precision deltas.
    assert jnp.allclose(out, ref, atol=1e-2, rtol=1e-2), float(jnp.max(jnp.abs(out - ref)))

    print("KERNEL_OK")
</pallas_src>

<mosaic_0001>
module attributes {stable_mosaic.version = 11 : i64} {
  func.func @vnet_kernel(%arg0: i32, %arg1: memref<1x256xi32, #tpu.memory_space<vmem>>, %arg2: memref<16x32xf32, #tpu.memory_space<vmem>>, %arg3: memref<1x32xf32, #tpu.memory_space<vmem>>, %arg4: memref<32x32xf32, #tpu.memory_space<vmem>>, %arg5: memref<1x32xf32, #tpu.memory_space<vmem>>, %arg6: memref<1x32xf32, #tpu.memory_space<vmem>>, %arg7: memref<1xf32, #tpu.memory_space<smem>>, %arg8: memref<1x256xf32, #tpu.memory_space<vmem>>) attributes {dimension_semantics = [#tpu.dimension_semantics<parallel>], iteration_bounds = array<i64: 1>, scalar_prefetch = 0 : i64, scratch_operands = 0 : i64, tpu.core_type = #tpu.core_type<tc>, window_params = [{transform_indices = @transform_0, window_bounds = array<i64: 1, 256>}, {pipeline_mode = #tpu.pipeline_mode<synchronous>, transform_indices = @transform_1, window_bounds = array<i64: 16, 32>}, {pipeline_mode = #tpu.pipeline_mode<synchronous>, transform_indices = @transform_2, window_bounds = array<i64: 1, 32>}, {pipeline_mode = #tpu.pipeline_mode<synchronous>, transform_indices = @transform_3, window_bounds = array<i64: 32, 32>}, {pipeline_mode = #tpu.pipeline_mode<synchronous>, transform_indices = @transform_4, window_bounds = array<i64: 1, 32>}, {pipeline_mode = #tpu.pipeline_mode<synchronous>, transform_indices = @transform_5, window_bounds = array<i64: 1, 32>}, {transform_indices = @transform_6, window_bounds = array<i64: 1>}, {transform_indices = @transform_7, window_bounds = array<i64: 1, 256>}]} {
    %c0 = arith.constant 0 : index
    %c0_0 = arith.constant 0 : index
    %0 = vector.load %arg2[%c0, %c0_0] : memref<16x32xf32, #tpu.memory_space<vmem>>, vector<16x32xf32>
    %c0_1 = arith.constant 0 : index
    %c0_2 = arith.constant 0 : index
    %1 = vector.load %arg3[%c0_1, %c0_2] : memref<1x32xf32, #tpu.memory_space<vmem>>, vector<1x32xf32>
    %2 = vector.broadcast %1 : vector<1x32xf32> to vector<16x32xf32>
    %3 = arith.addf %0, %2 : vector<16x32xf32>
    %4 = arith.negf %3 : vector<16x32xf32>
    %5 = math.exp %4 : vector<16x32xf32>
    %cst = arith.constant 1.000000e+00 : f32
    %6 = vector.broadcast %cst : f32 to vector<16x32xf32>
    %7 = arith.addf %6, %5 : vector<16x32xf32>
    %8 = arith.divf %6, %7 : vector<16x32xf32>
    %9 = arith.mulf %3, %8 : vector<16x32xf32>
    %c0_3 = arith.constant 0 : index
    %c0_4 = arith.constant 0 : index
    %10 = vector.load %arg4[%c0_3, %c0_4] : memref<32x32xf32, #tpu.memory_space<vmem>>, vector<32x32xf32>
    %cst_5 = arith.constant dense<0.000000e+00> : vector<16x32xf32>
    %11 = tpu.matmul %9, %10, %cst_5 {dimension_numbers = #tpu.dot_dimension_numbers<[1], [0], [0], [1], [0, 0, 1, 1], [], []>} : vector<16x32xf32>, vector<32x32xf32>, vector<16x32xf32> -> vector<16x32xf32>
    %c0_6 = arith.constant 0 : index
    %c0_7 = arith.constant 0 : index
    %12 = vector.load %arg5[%c0_6, %c0_7] : memref<1x32xf32, #tpu.memory_space<vmem>>, vector<1x32xf32>
    %13 = vector.broadcast %12 : vector<1x32xf32> to vector<16x32xf32>
    %14 = arith.addf %11, %13 : vector<16x32xf32>
    %15 = arith.negf %14 : vector<16x32xf32>
    %16 = math.exp %15 : vector<16x32xf32>
    %cst_8 = arith.constant 1.000000e+00 : f32
    %17 = vector.broadcast %cst_8 : f32 to vector<16x32xf32>
    %18 = arith.addf %17, %16 : vector<16x32xf32>
    %19 = arith.divf %17, %18 : vector<16x32xf32>
    %20 = arith.mulf %14, %19 : vector<16x32xf32>
    %c0_9 = arith.constant 0 : index
    %c0_10 = arith.constant 0 : index
    %21 = vector.load %arg6[%c0_9, %c0_10] : memref<1x32xf32, #tpu.memory_space<vmem>>, vector<1x32xf32>
    %22 = vector.broadcast %21 : vector<1x32xf32> to vector<16x32xf32>
    %23 = arith.mulf %20, %22 : vector<16x32xf32>
    %cst_11 = arith.constant dense<0.000000e+00> : vector<16xf32>
    %24 = vector.multi_reduction <add>, %23, %cst_11 [1] : vector<16x32xf32> to vector<16xf32>
    %25 = vector.shape_cast %24 : vector<16xf32> to vector<16x1xf32>
    %c0_12 = arith.constant 0 : index
    %26 = memref.load %arg7[%c0_12] : memref<1xf32, #tpu.memory_space<smem>>
    %27 = vector.broadcast %26 : f32 to vector<16x1xf32>
    %28 = arith.addf %25, %27 : vector<16x1xf32>
    %c0_13 = arith.constant 0 : index
    %c0_14 = arith.constant 0 : index
    %29 = vector.load %arg1[%c0_13, %c0_14] : memref<1x256xi32, #tpu.memory_space<vmem>>, vector<1x256xi32>
    %30 = tpu.iota {dimensions = array<i32: 0>} : vector<16x256xi32>
    %31 = vector.broadcast %29 : vector<1x256xi32> to vector<16x256xi32>
    %32 = arith.cmpi eq, %30, %31 : vector<16x256xi32>
    %cst_15 = arith.constant 0.000000e+00 : f32
    %33 = vector.shape_cast %28 : vector<16x1xf32> to vector<16x1xf32>
    %34 = vector.broadcast %33 : vector<16x1xf32> to vector<16x256xf32>
    %35 = vector.broadcast %cst_15 : f32 to vector<16x256xf32>
    %36 = arith.select %32, %34, %35 : vector<16x256xi1>, vector<16x256xf32>
    %cst_16 = arith.constant dense<0.000000e+00> : vector<256xf32>
    %37 = vector.multi_reduction <add>, %36, %cst_16 [0] : vector<16x256xf32> to vector<256xf32>
    %38 = vector.shape_cast %37 : vector<256xf32> to vector<1x256xf32>
    %c0_17 = arith.constant 0 : index
    %c0_18 = arith.constant 0 : index
    %39 = vector.load %arg8[%c0_17, %c0_18] : memref<1x256xf32, #tpu.memory_space<vmem>>, vector<1x256xf32>
    tpu.vector_store %arg8[%c0_17, %c0_18], %38 {strides = array<i32>} : memref<1x256xf32, #tpu.memory_space<vmem>>, vector<1x256xf32>,
    return
  }
  func.func @transform_0(%arg0: i32) -> (i32, i32) {
    %c0_i32 = arith.constant 0 : i32
    %c0_i32_0 = arith.constant 0 : i32
    return %c0_i32, %arg0 : i32, i32
  }
  func.func @transform_1(%arg0: i32) -> (i32, i32) {
    %c0_i32 = arith.constant 0 : i32
    %c0_i32_0 = arith.constant 0 : i32
    %c0_i32_1 = arith.constant 0 : i32
    return %c0_i32, %c0_i32_0 : i32, i32
  }
  func.func @transform_2(%arg0: i32) -> (i32, i32) {
    %c0_i32 = arith.constant 0 : i32
    %c0_i32_0 = arith.constant 0 : i32
    %c0_i32_1 = arith.constant 0 : i32
    return %c0_i32, %c0_i32_0 : i32, i32
  }
  func.func @transform_3(%arg0: i32) -> (i32, i32) {
    %c0_i32 = arith.constant 0 : i32
    %c0_i32_0 = arith.constant 0 : i32
    %c0_i32_1 = arith.constant 0 : i32
    return %c0_i32, %c0_i32_0 : i32, i32
  }
  func.func @transform_4(%arg0: i32) -> (i32, i32) {
    %c0_i32 = arith.constant 0 : i32
    %c0_i32_0 = arith.constant 0 : i32
    %c0_i32_1 = arith.constant 0 : i32
    return %c0_i32, %c0_i32_0 : i32, i32
  }
  func.func @transform_5(%arg0: i32) -> (i32, i32) {
    %c0_i32 = arith.constant 0 : i32
    %c0_i32_0 = arith.constant 0 : i32
    %c0_i32_1 = arith.constant 0 : i32
    return %c0_i32, %c0_i32_0 : i32, i32
  }
  func.func @transform_6(%arg0: i32) -> i32 {
    %c0_i32 = arith.constant 0 : i32
    %c0_i32_0 = arith.constant 0 : i32
    return %c0_i32 : i32
  }
  func.func @transform_7(%arg0: i32) -> (i32, i32) {
    %c0_i32 = arith.constant 0 : i32
    %c0_i32_0 = arith.constant 0 : i32
    return %c0_i32, %arg0 : i32, i32
  }
}

</mosaic_0001>

<llo_original>
// kernel: tpu_custom_call.1
$region0: #{tpu_custom_call.1}
  #allocation0 [shape = 'u32[]', space=smem, size = 0x4, offset = 0x4, fixed_abs, tag = 'smem constant byte address 0x4 - core index']
  #allocation1 [shape = 'u32[144,128]{1,0:T(1,128)}', space=vmem, size = 0x12000, scoped, tag = 'internal scratch']
  #allocation2 [shape = 'f32[1]{0:T(128)S(6)}', space=smem, size = 0x200, scoped, tag = 'scoped memory for tpu_custom_call.1']
  %s0 = inlined_call_operand.vmem [shape: s32[1,256], index: 0, kind: input, shape index: {}]
  %s1 = inlined_call_operand.hbm [shape: f32[16,32], index: 1, kind: input, shape index: {}]
  %s2 = inlined_call_operand.vmem [shape: f32[1,32], index: 2, kind: input, shape index: {}]
  %s3 = inlined_call_operand.hbm [shape: f32[32,32], index: 3, kind: input, shape index: {}]
  %s4 = inlined_call_operand.vmem [shape: f32[1,32], index: 4, kind: input, shape index: {}]
  %s5 = inlined_call_operand.vmem [shape: f32[1,32], index: 5, kind: input, shape index: {}]
  %s6 = inlined_call_operand.<no memory space> [shape: f32[1], index: 6, kind: input, shape index: {}]
  %s7 = inlined_call_operand.hbm [shape: f32[1,256], index: 7, kind: output, shape index: {}]
  %s8 = sld [smem:[#allocation0]]
  $region46: #{tpu_custom_call.1} parent=0
    _
  %s10 = ssub.s32 1, %s8
  %s11 = scalar_select 0, %s10, %s8
  %12 = sst [smem:[#allocation2]] %s6
  $region1: #{tpu_custom_call.1} parent=0
    #allocation3 [shape = 'u8[8192]{0}', space=vmem, size = 0x2000, scoped, tag = 'input window, operand 1, single buffered']
    #allocation4 [shape = 's32[1]{0}', space=sflag, size = 0x4, scoped, tag = 'scoped memory for tpu_custom_call.1']
    #allocation5 [shape = 's32[1]{0}', space=sflag, size = 0x4, scoped, tag = 'scoped memory for tpu_custom_call.1']
    #allocation6 [shape = 'u8[16384]{0}', space=vmem, size = 0x4000, scoped, tag = 'input window, operand 3, single buffered']
    #allocation7 [shape = 's32[1]{0}', space=sflag, size = 0x4, scoped, tag = 'scoped memory for tpu_custom_call.1']
    #allocation8 [shape = 'u8[1024]{0}', space=vmem, size = 0x400, scoped, tag = 'output window, operand 0, single buffered']
    %13 = vsyncpa [#allocation4], 0
    %14 = vsyncpa [#allocation7], 0
    %15 = vsyncpa [#allocation5], 0
    // Predicated region
    $region2: #{tpu_custom_call.1} parent=1 // pred_check
      _
    $region3: #{tpu_custom_call.1} parent=1 // pred_check_branch
      %17 = sbr.rel (0) target = $region5
    $region4: #{tpu_custom_call.1} parent=1 // pred_region
      _
    $region5: #{tpu_custom_call.1} parent=1 // pred_fallthru
      _
    // Predicated region
    $region6: #{tpu_custom_call.1} parent=1 // pred_check
      _
    $region7: #{tpu_custom_call.1} parent=1 // pred_check_branch
      %19 = sbr.rel (0) target = $region9
    $region8: #{tpu_custom_call.1} parent=1 // pred_region
      %s21 = ssub.s32 256, 256
      %22 = vsyncadd [#allocation4], %s21
      %s23 = sshll.u32 [#allocation3], 4
      %s24 = int_to_ptr.vmem [resolvable:$true] %s23
      %29 = dma.hbm_to_vmem [thread:$0]  %s1, 256, %s24, [#allocation4], 128, 128, 8
    $region9: #{tpu_custom_call.1} parent=1 // pred_fallthru
      _
    // Predicated region
    $region10: #{tpu_custom_call.1} parent=1 // pred_check
      _
    $region11: #{tpu_custom_call.1} parent=1 // pred_check_branch
      %31 = sbr.rel (0) target = $region13
    $region12: #{tpu_custom_call.1} parent=1 // pred_region
      _
    $region13: #{tpu_custom_call.1} parent=1 // pred_fallthru
      _
    // Predicated region
    $region14: #{tpu_custom_call.1} parent=1 // pred_check
      _
    $region15: #{tpu_custom_call.1} parent=1 // pred_check_branch
      %33 = sbr.rel (0) target = $region17
    $region16: #{tpu_custom_call.1} parent=1 // pred_region
      %s35 = ssub.s32 512, 512
      %36 = vsyncadd [#allocation7], %s35
      %s37 = sshll.u32 [#allocation6], 4
      %s38 = int_to_ptr.vmem [resolvable:$true] %s37
      %43 = dma.hbm_to_vmem [thread:$0]  %s3, 512, %s38, [#allocation7], 128, 128, 8
    $region17: #{tpu_custom_call.1} parent=1 // pred_fallthru
      _
    // Predicated region
    $region18: #{tpu_custom_call.1} parent=1 // pred_check
      _
    $region19: #{tpu_custom_call.1} parent=1 // pred_check_branch
      %45 = sbr.rel (0) target = $region21
    $region20: #{tpu_custom_call.1} parent=1 // pred_region
      _
    $region21: #{tpu_custom_call.1} parent=1 // pred_fallthru
      _
    // Predicated region
    $region22: #{tpu_custom_call.1} parent=1 // pred_check
      _
    $region23: #{tpu_custom_call.1} parent=1 // pred_check_branch
      %47 = sbr.rel (0) target = $region25
    $region24: #{tpu_custom_call.1} parent=1 // pred_region
      _
    $region25: #{tpu_custom_call.1} parent=1 // pred_fallthru
      _
    // Predicated region
    $region26: #{tpu_custom_call.1} parent=1 // pred_check
      _
    $region27: #{tpu_custom_call.1} parent=1 // pred_check_branch
      %49 = sbr.rel (0) target = $region29
    $region28: #{tpu_custom_call.1} parent=1 // pred_region
      _
    $region29: #{tpu_custom_call.1} parent=1 // pred_fallthru
      _
    // Predicated region
    $region30: #{tpu_custom_call.1} parent=1 // pred_check
      _
    $region31: #{tpu_custom_call.1} parent=1 // pred_check_branch
      %51 = sbr.rel (0) target = $region33
    $region32: #{tpu_custom_call.1} parent=1 // pred_region
      %52 = dma.done [#allocation4], 256
    $region33: #{tpu_custom_call.1} parent=1 // pred_fallthru
      _
    // Predicated region
    $region34: #{tpu_custom_call.1} parent=1 // pred_check
      _
    $region35: #{tpu_custom_call.1} parent=1 // pred_check_branch
      %54 = sbr.rel (0) target = $region37
    $region36: #{tpu_custom_call.1} parent=1 // pred_region
      %55 = dma.done [#allocation7], 512
    $region37: #{tpu_custom_call.1} parent=1 // pred_fallthru
      _
    %v56 = vld [vmem:[#allocation3] sm:$0xff]
    %v57 = vld [vmem:[#allocation3 + $0x8] sm:$0xff]
    %v58 = vld [vmem:[%s2] sm:$0x1]
    %v60 = vlaneseq
    %v61 = vshrl.u32 %v60, 7
    %v62 = vsub.s32 0, %v61
    %v63 = vrot.slane %v58, %v62
    %v65 = vadd.f32 %v56, %v63
    %v66 = vadd.f32 %v57, %v63
    %v67 = vxor.u32 %v65, 2147483648
    %v68 = vxor.u32 %v66, 2147483648
    %v69 = vmul.f32 %v67, 1.442695
    %v70 = vpow.pop %v69
    %v71 = vmul.f32 %v68, 1.442695
    %v72 = vpow.pop %v71
    %v73 = vadd.f32 %v70, 1.0
    %v74 = vadd.f32 %v72, 1.0
    %v75 = vrcp.pop %v73
    %v76 = vmul.f32 1.0, %v75
    %v77 = vrcp.pop %v74
    %v78 = vmul.f32 1.0, %v77
    %v79 = vmul.f32 %v65, %v76
    %v80 = vmul.f32 %v66, %v78
    %v81 = vld [vmem:[#allocation6] sm:$0xff]
    %v82 = vld [vmem:[#allocation6 + $0x8] sm:$0xff]
    %v83 = vld [vmem:[#allocation6 + $0x10] sm:$0xff]
    %v84 = vld [vmem:[#allocation6 + $0x18] sm:$0xff]
    %v85 = vld [vmem:[%s4] sm:$0x1]
    %v87 = vlaneseq
    %v88 = vshrl.u32 %v87, 7
    %v89 = vsub.s32 0, %v88
    %v90 = vrot.slane %v85, %v89
    %vm92 = vcmask 261120
    %v94 = vsel %vm92, %v79, 0
    %v97 = vsel %vm92, %v80, 0
    %99 = vmatprep.subr.mxu0 0.0
    %100 = vmatpush1.msra.mxu0 %v81
    %101 = vmatprep.subr.mxu0 0.0
    %102 = vmatpush1.msra.mxu0 %v82
    %103 = vmatprep.subr.mxu0 0.0
    %104 = vmatpush1.msra.mxu0 %v83
    %105 = vmatprep.subr.mxu0 0.0
    %106 = vmatpush1.msra.mxu0 %v84
    %107 = vmatprep.subr.mxu0 0.0
    %108 = vmatpush1.msra.mxu0 0.0
    %109 = vmatprep.subr.mxu0 0.0
    %110 = vmatpush1.msra.mxu0 0.0
    %111 = vmatprep.subr.mxu0 0.0
    %112 = vmatpush1.msra.mxu0 0.0
    %113 = vmatprep.subr.mxu0 0.0
    %114 = vmatpush1.msra.mxu0 0.0
    %115 = vmatprep.subr.mxu0 0.0
    %116 = vmatpush1.msra.mxu0 0.0
    %117 = vmatprep.subr.mxu0 0.0
    %118 = vmatpush1.msra.mxu0 0.0
    %119 = vmatprep.subr.mxu0 0.0
    %120 = vmatpush1.msra.mxu0 0.0
    %121 = vmatprep.subr.mxu0 0.0
    %122 = vmatpush1.msra.mxu0 0.0
    %123 = vmatprep.subr.mxu0 0.0
    %124 = vmatpush1.msra.mxu0 0.0
    %125 = vmatprep.subr.mxu0 0.0
    %126 = vmatpush1.msra.mxu0 0.0
    %127 = vmatprep.subr.mxu0 0.0
    %128 = vmatpush1.msra.mxu0 0.0
    %129 = vmatprep.subr.mxu0 0.0
    %130 = vmatpush1.msra.mxu0 0.0
    %131 = vmatprep.subr.mxu0 0.0
    %132 = vmatpush1.msra.mxu0 0.0
    %133 = vmatprep.subr.mxu0 0.0
    %134 = vmatpush1.msra.mxu0 0.0
    %135 = vmatprep.subr.mxu0 0.0
    %136 = vmatpush1.msra.mxu0 0.0
    %137 = vmatprep.subr.mxu0 0.0
    %138 = vmatpush1.msra.mxu0 0.0
    %139 = vmatprep.subr.mxu0 0.0
    %140 = vmatpush1.msra.mxu0 0.0
    %141 = vmatprep.subr.mxu0 0.0
    %142 = vmatpush1.msra.mxu0 0.0
    %143 = vmatprep.subr.mxu0 0.0
    %144 = vmatpush1.msra.mxu0 0.0
    %145 = vmatprep.subr.mxu0 0.0
    %146 = vmatpush1.msra.mxu0 0.0
    %147 = vmatprep.subr.mxu0 0.0
    %148 = vmatpush1.msra.mxu0 0.0
    %149 = vmatprep.subr.mxu0 0.0
    %150 = vmatpush1.msra.mxu0 0.0
    %151 = vmatprep.subr.mxu0 0.0
    %152 = vmatpush1.msra.mxu0 0.0
    %153 = vmatprep.subr.mxu0 0.0
    %154 = vmatpush1.msra.mxu0 0.0
    %155 = vmatprep.subr.mxu0 0.0
    %156 = vmatpush1.msra.mxu0 0.0
    %157 = vmatprep.subr.mxu0 0.0
    %158 = vmatpush1.msra.mxu0 0.0
    %159 = vmatprep.subr.mxu0 0.0
    %160 = vmatpush1.msra.mxu0 0.0
    %161 = vmatprep.subr.mxu0 0.0
    %162 = vmatpush1.msra.mxu0 0.0
    %163 = vmatprep.mubr.f32.mxu0 0.0
    %164 = vmatmul.mubr.f32.gmra.mrb[0].mxu0 %v94
    %v165 = vpop.f32.mrb[0].mxu0
    %v166 = vadd.f32 %v90, %v165
    %v167 = vpop.f32.mrb[0].mxu0
    %168 = vmatprep.mubr.f32.mxu0 0.0
    %169 = vmatmul.mubr.f32.gmra.mrb[0].mxu0 %v97
    %v170 = vpop.f32.mrb[0].mxu0
    %v171 = vadd.f32 %v90, %v170
    %v172 = vpop.f32.mrb[0].mxu0
    %173 = vdwg.mxu0
    %v174 = vxor.u32 %v166, 2147483648
    %v175 = vxor.u32 %v171, 2147483648
    %v176 = vmul.f32 %v174, 1.442695
    %v177 = vpow.pop %v176
    %v178 = vmul.f32 %v175, 1.442695
    %v179 = vpow.pop %v178
    %v180 = vadd.f32 %v177, 1.0
    %v181 = vadd.f32 %v179, 1.0
    %v182 = vrcp.pop %v180
    %v183 = vmul.f32 1.0, %v182
    %v184 = vrcp.pop %v181
    %v185 = vmul.f32 1.0, %v184
    %v186 = vmul.f32 %v166, %v183
    %v187 = vmul.f32 %v171, %v185
    %v188 = vld [vmem:[%s5] sm:$0x1]
    %v190 = vlaneseq
    %v191 = vshrl.u32 %v190, 7
    %v192 = vsub.s32 0, %v191
    %v193 = vrot.slane %v188, %v192
    %v195 = vmul.f32 %v186, %v193
    %v196 = vmul.f32 %v187, %v193
    %v197 = vsel %vm92, %v195, 0.0
    %198 = vadd.xlane.f32.xlu0 %v197
    %v199 = vpop.xlane.xlu0 %198
    %v200 = vsel %vm92, %v196, 0.0
    %201 = vadd.xlane.f32.xlu0 %v200
    %v202 = vpop.xlane.xlu0 %201
    %s203 = sld [smem:[#allocation2]]
    %v204 = vstv %s203
    %v205 = vadd.f32 %v199, %v204
    %v206 = vadd.f32 %v202, %v204
    %v207 = vld [vmem:[%s0] sm:$0x3]
    %v208 = vlaneseq
    %v209 = vshrl.u32 %v208, 7
    %v210 = vadd.s32 %v209, 8
    %v211 = vlaneseq
    %v212 = vshrl.u32 %v211, 7
    %v213 = vsub.s32 0, %v212
    %v214 = vrot.slane %v207, %v213
    %v215 = vlaneseq
    %v216 = vshrl.u32 %v215, 7
    %v217 = vsub.s32 1, %v216
    %v218 = vrot.slane %v207, %v217
    %vm219 = vcmp.eq.s32.totalorder %v209, %v214
    %vm220 = vcmp.eq.s32.totalorder %v209, %v218
    %vm221 = vcmp.eq.s32.totalorder %v210, %v214
    %vm222 = vcmp.eq.s32.totalorder %v210, %v218
    %v223 = vsel %vm219, %v205, 0.0
    %v224 = vsel %vm220, %v205, 0.0
    %v225 = vsel %vm221, %v206, 0.0
    %v226 = vsel %vm222, %v206, 0.0
    %v227 = vadd.f32 %v223, %v225
    %v228 = vrot.slane %v227, 4
    %v229 = vadd.f32 %v227, %v228
    %v230 = vrot.slane %v229, 2
    %v231 = vadd.f32 %v229, %v230
    %v232 = vrot.slane %v231, 1
    %v233 = vadd.f32 %v231, %v232
    %v234 = vadd.f32 %v224, %v226
    %v235 = vrot.slane %v234, 4
    %v236 = vadd.f32 %v234, %v235
    %v237 = vrot.slane %v236, 2
    %v238 = vadd.f32 %v236, %v237
    %v239 = vrot.slane %v238, 1
    %v240 = vadd.f32 %v238, %v239
    %v243 = vcombine.low %v233, %v240
    %v245 = vunpack.c.l.s4 1966171168
    %v246 = vunpack.c.0.s8 %v245
    %v247 = vlaneseq
    %v248 = vshrl.u32 %v247, 7
    %v249 = vsub.s32 %v246, %v248
    %v250 = vrot.slane %v243, %v249
    %v252 = vunpack.c.l.s4 1966171168
    %v253 = vunpack.c.0.s8 %v252
    %v254 = vlaneseq
    %v255 = vshrl.u32 %v254, 7
    %v256 = vsub.s32 %v253, %v255
    %v257 = vrot.slane %v250, %v256
    %v259 = vlaneseq
    %vm260 = vcmp.ge.s32.totalorder %v259, 0
    %vm261 = vcmp.lt.s32.totalorder %v259, 256
    %vm262 = vmand %vm260, %vm261
    %263 = vst.msk [vmem:[#allocation8] sm:$0x3] %vm262, %v257
    // Predicated region
    $region38: #{tpu_custom_call.1} parent=1 // pred_check
      _
    $region39: #{tpu_custom_call.1} parent=1 // pred_check_branch
      %265 = sbr.rel (0) target = $region41
    $region40: #{tpu_custom_call.1} parent=1 // pred_region
      %s267 = ssub.s32 32, 32
      %268 = vsyncadd [#allocation5], %s267
      %s270 = sshll.u32 [#allocation8], 4
      %s271 = int_to_ptr.vmem [resolvable:$true] %s270
      %273 = dma.vmem_to_hbm [thread:$0]  %s271, 32, %s7, [#allocation5]
    $region41: #{tpu_custom_call.1} parent=1 // pred_fallthru
      _
    // Predicated region
    $region42: #{tpu_custom_call.1} parent=1 // pred_check
      _
    $region43: #{tpu_custom_call.1} parent=1 // pred_check_branch
      %275 = sbr.rel (0) target = $region45
    $region44: #{tpu_custom_call.1} parent=1 // pred_region
      %276 = dma.done [#allocation5], 32
    $region45: #{tpu_custom_call.1} parent=1 // pred_fallthru
      _
    %277 = vsyncpa [#allocation4], 1
    %278 = vsyncpa [#allocation7], 1
    %279 = vsyncpa [#allocation5], 1

</llo_original>
